<compile_context>
chip_gen: v7x
topology: tpu7x:2x2x1
jax: 0.10.0
libtpu: 0.0.40
codegen_flags: <defaults>
</compile_context>

<pallas_src>
import jax
import jax.numpy as jnp
from jax.experimental import pallas as pl
from jax.experimental.pallas import tpu as pltpu

K_HIDDEN = 128   # hidden width "k" from the PyTorch module
LANE = 128       # vreg lane width
SUBLANE = 8      # f32 sublane count


def _round_up(n, m):
    return ((n + m - 1) // m) * m


def mlp_kernel(x_ref, w1_ref, b1_ref, w2_ref, b2_ref, w3_ref, b3_ref, o_ref):
    """Fused 3-layer MLP on one batch tile, everything resident in VMEM.

    MXU operands are bf16 (weights arrive bf16; activations are cast right
    before each dot), accumulation is f32 via preferred_element_type, and all
    elementwise work (bias add, ReLU, output cast) is f32 on the VPU.
    """
    x = x_ref[...].astype(jnp.bfloat16)
    h1 = jnp.dot(x, w1_ref[...], preferred_element_type=jnp.float32) + b1_ref[...]
    h1 = jnp.maximum(h1, 0.0)
    h2 = jnp.dot(h1.astype(jnp.bfloat16), w2_ref[...],
                 preferred_element_type=jnp.float32) + b2_ref[...]
    h2 = jnp.maximum(h2, 0.0)
    out = jnp.dot(h2.astype(jnp.bfloat16), w3_ref[...],
                  preferred_element_type=jnp.float32) + b3_ref[...]
    o_ref[...] = out.astype(o_ref.dtype)


@jax.jit
def two_hidden_layer_fc(x, w1, b1, w2, b2, w3, b3):
    """x: [B, d_in] f32; w*: [in, out]; b*: [1, out]. Returns [B, d_out] f32."""
    B, d_in = x.shape
    k = w1.shape[1]
    d_out = w3.shape[1]

    # ---- layout plumbing (zero math change): lane-dense feature dims ----
    d_in_p = _round_up(d_in, LANE)    # fill the 128-lane vreg / MXU K dim
    d_out_p = _round_up(d_out, LANE)  # unmasked (lane-dense) output stores

    # ---- batch tiling ----
    # Small B: a single grid step (per-step overhead ~0.35us dominates here,
    # and an 8-row tile leaves the 128/256-row MXU mostly idle).
    # Large B: 256-row tiles -> MXU M dim matches v6e/v7x's 256-row array and
    # the "parallel" batch axis shards steps across v7x's two TensorCores.
    if B <= 512:
        tile_b = _round_up(B, SUBLANE)
        B_p = tile_b
    else:
        tile_b = 256
        B_p = _round_up(B, tile_b)

    # Pad inputs / params. Padded rows & columns are zeros, so the math of
    # the original module is unchanged; we slice the result back at the end.
    x_p = jnp.zeros((B_p, d_in_p), x.dtype).at[:B, :d_in].set(x)
    w1_p = jnp.zeros((d_in_p, k), jnp.bfloat16).at[:d_in, :].set(
        w1.astype(jnp.bfloat16))
    w2_p = w2.astype(jnp.bfloat16)
    w3_p = jnp.zeros((k, d_out_p), jnp.bfloat16).at[:, :d_out].set(
        w3.astype(jnp.bfloat16))
    b1_p = b1.astype(jnp.float32)
    b2_p = b2.astype(jnp.float32)
    b3_p = jnp.zeros((1, d_out_p), jnp.float32).at[:, :d_out].set(
        b3.astype(jnp.float32))

    grid = (B_p // tile_b,)

    # Advisory cost estimate so XLA doesn't treat this tiny call as opaque.
    flops = 2 * B_p * (d_in_p * k + k * k + k * d_out_p)
    bytes_accessed = (
        B_p * d_in_p * 4                           # x (f32 in)
        + (d_in_p * k + k * k + k * d_out_p) * 2   # bf16 weights
        + (k + k + d_out_p) * 4                    # f32 biases
        + B_p * d_out_p * 4                        # f32 out
    )

    # Weights/biases use a constant index_map so they stay VMEM-resident
    # across batch tiles (~115 KB total here -- double-buffering them is
    # harmless; revisit with pl.Buffered(1) only if K_HIDDEN is scaled up).
    const = lambda shape: pl.BlockSpec(shape, lambda i: (0, 0))

    out_p = pl.pallas_call(
        mlp_kernel,
        out_shape=jax.ShapeDtypeStruct((B_p, d_out_p), x.dtype),
        grid_spec=pl.GridSpec(
            grid=grid,
            in_specs=[
                pl.BlockSpec((tile_b, d_in_p), lambda i: (i, 0)),  # x tile
                const(w1_p.shape), const(b1_p.shape),              # fc1
                const(w2_p.shape), const(b2_p.shape),              # fc2
                const(w3_p.shape), const(b3_p.shape),              # fc3
            ],
            out_specs=pl.BlockSpec((tile_b, d_out_p), lambda i: (i, 0)),
        ),
        compiler_params=pltpu.CompilerParams(
            dimension_semantics=("parallel",),
            vmem_limit_bytes=32 * 1024 * 1024,  # safe on v5e/v6e/v7x
        ),
        cost_estimate=pl.CostEstimate(
            flops=flops, transcendentals=0, bytes_accessed=bytes_accessed),
    )(x_p, w1_p, b1_p, w2_p, b2_p, w3_p, b3_p)

    return out_p[:B, :d_out]


def init_linear(key, fan_in, fan_out, dtype=jnp.float32):
    """Deterministic init mimicking nn.Linear's U(-1/sqrt(fan_in), 1/sqrt(fan_in)).

    Returns W as [in, out] (already transposed for x @ W) and b as [1, out].
    """
    kw, kb = jax.random.split(key)
    bound = 1.0 / jnp.sqrt(jnp.asarray(fan_in, dtype))
    w = jax.random.uniform(kw, (fan_in, fan_out), dtype, -bound, bound)
    b = jax.random.uniform(kb, (1, fan_out), dtype, -bound, bound)
    return w, b


if __name__ == "__main__":
    # Small shapes implied by the forward pass (input_shape=64, out_dim=32).
    B = 16
    D_IN = 64
    D_OUT = 32

    key = jax.random.PRNGKey(0)
    kx, k1, k2, k3 = jax.random.split(key, 4)

    x = jax.random.normal(kx, (B, D_IN), jnp.float32)
    w1, b1 = init_linear(k1, D_IN, K_HIDDEN)
    w2, b2 = init_linear(k2, K_HIDDEN, K_HIDDEN)
    w3, b3 = init_linear(k3, K_HIDDEN, D_OUT)

    out = two_hidden_layer_fc(x, w1, b1, w2, b2, w3, b3)
    out = jax.block_until_ready(out)

    # Reference in plain f32 JAX. Tolerance relaxed because the kernel uses
    # bf16 MXU operands (f32 accumulation).
    h1 = jnp.maximum(x @ w1 + b1, 0.0)
    h2 = jnp.maximum(h1 @ w2 + b2, 0.0)
    ref = h2 @ w3 + b3
    assert out.shape == (B, D_OUT)
    assert jnp.allclose(out, ref, atol=5e-2, rtol=5e-2), float(
        jnp.max(jnp.abs(out - ref)))

    print("KERNEL_OK")
</pallas_src>

<mosaic_0001>
module attributes {stable_mosaic.version = 11 : i64} {
  func.func @mlp_kernel(%arg0: i32, %arg1: memref<16x128xf32, #tpu.memory_space<vmem>>, %arg2: memref<128x128xbf16, #tpu.memory_space<vmem>>, %arg3: memref<1x128xf32, #tpu.memory_space<vmem>>, %arg4: memref<128x128xbf16, #tpu.memory_space<vmem>>, %arg5: memref<1x128xf32, #tpu.memory_space<vmem>>, %arg6: memref<128x128xbf16, #tpu.memory_space<vmem>>, %arg7: memref<1x128xf32, #tpu.memory_space<vmem>>, %arg8: memref<16x128xf32, #tpu.memory_space<vmem>>) attributes {dimension_semantics = [#tpu.dimension_semantics<parallel>], iteration_bounds = array<i64: 1>, scalar_prefetch = 0 : i64, scratch_operands = 0 : i64, tpu.core_type = #tpu.core_type<tc>, window_params = [{transform_indices = @transform_0, window_bounds = array<i64: 16, 128>}, {pipeline_mode = #tpu.pipeline_mode<synchronous>, transform_indices = @transform_1, window_bounds = array<i64: 128, 128>}, {pipeline_mode = #tpu.pipeline_mode<synchronous>, transform_indices = @transform_2, window_bounds = array<i64: 1, 128>}, {pipeline_mode = #tpu.pipeline_mode<synchronous>, transform_indices = @transform_3, window_bounds = array<i64: 128, 128>}, {pipeline_mode = #tpu.pipeline_mode<synchronous>, transform_indices = @transform_4, window_bounds = array<i64: 1, 128>}, {pipeline_mode = #tpu.pipeline_mode<synchronous>, transform_indices = @transform_5, window_bounds = array<i64: 128, 128>}, {pipeline_mode = #tpu.pipeline_mode<synchronous>, transform_indices = @transform_6, window_bounds = array<i64: 1, 128>}, {transform_indices = @transform_7, window_bounds = array<i64: 16, 128>}]} {
    %c0 = arith.constant 0 : index
    %c0_0 = arith.constant 0 : index
    %0 = vector.load %arg1[%c0, %c0_0] : memref<16x128xf32, #tpu.memory_space<vmem>>, vector<16x128xf32>
    %1 = arith.truncf %0 : vector<16x128xf32> to vector<16x128xbf16>
    %c0_1 = arith.constant 0 : index
    %c0_2 = arith.constant 0 : index
    %2 = vector.load %arg2[%c0_1, %c0_2] : memref<128x128xbf16, #tpu.memory_space<vmem>>, vector<128x128xbf16>
    %cst = arith.constant dense<0.000000e+00> : vector<16x128xf32>
    %3 = tpu.matmul %1, %2, %cst {dimension_numbers = #tpu.dot_dimension_numbers<[1], [0], [0], [1], [0, 0, 1, 1], [], []>} : vector<16x128xbf16>, vector<128x128xbf16>, vector<16x128xf32> -> vector<16x128xf32>
    %c0_3 = arith.constant 0 : index
    %c0_4 = arith.constant 0 : index
    %4 = vector.load %arg3[%c0_3, %c0_4] : memref<1x128xf32, #tpu.memory_space<vmem>>, vector<1x128xf32>
    %5 = vector.broadcast %4 : vector<1x128xf32> to vector<16x128xf32>
    %6 = arith.addf %3, %5 : vector<16x128xf32>
    %cst_5 = arith.constant 0.000000e+00 : f32
    %7 = vector.broadcast %cst_5 : f32 to vector<16x128xf32>
    %8 = arith.maximumf %6, %7 : vector<16x128xf32>
    %9 = arith.truncf %8 : vector<16x128xf32> to vector<16x128xbf16>
    %c0_6 = arith.constant 0 : index
    %c0_7 = arith.constant 0 : index
    %10 = vector.load %arg4[%c0_6, %c0_7] : memref<128x128xbf16, #tpu.memory_space<vmem>>, vector<128x128xbf16>
    %cst_8 = arith.constant dense<0.000000e+00> : vector<16x128xf32>
    %11 = tpu.matmul %9, %10, %cst_8 {dimension_numbers = #tpu.dot_dimension_numbers<[1], [0], [0], [1], [0, 0, 1, 1], [], []>} : vector<16x128xbf16>, vector<128x128xbf16>, vector<16x128xf32> -> vector<16x128xf32>
    %c0_9 = arith.constant 0 : index
    %c0_10 = arith.constant 0 : index
    %12 = vector.load %arg5[%c0_9, %c0_10] : memref<1x128xf32, #tpu.memory_space<vmem>>, vector<1x128xf32>
    %13 = vector.broadcast %12 : vector<1x128xf32> to vector<16x128xf32>
    %14 = arith.addf %11, %13 : vector<16x128xf32>
    %cst_11 = arith.constant 0.000000e+00 : f32
    %15 = vector.broadcast %cst_11 : f32 to vector<16x128xf32>
    %16 = arith.maximumf %14, %15 : vector<16x128xf32>
    %17 = arith.truncf %16 : vector<16x128xf32> to vector<16x128xbf16>
    %c0_12 = arith.constant 0 : index
    %c0_13 = arith.constant 0 : index
    %18 = vector.load %arg6[%c0_12, %c0_13] : memref<128x128xbf16, #tpu.memory_space<vmem>>, vector<128x128xbf16>
    %cst_14 = arith.constant dense<0.000000e+00> : vector<16x128xf32>
    %19 = tpu.matmul %17, %18, %cst_14 {dimension_numbers = #tpu.dot_dimension_numbers<[1], [0], [0], [1], [0, 0, 1, 1], [], []>} : vector<16x128xbf16>, vector<128x128xbf16>, vector<16x128xf32> -> vector<16x128xf32>
    %c0_15 = arith.constant 0 : index
    %c0_16 = arith.constant 0 : index
    %20 = vector.load %arg7[%c0_15, %c0_16] : memref<1x128xf32, #tpu.memory_space<vmem>>, vector<1x128xf32>
    %21 = vector.broadcast %20 : vector<1x128xf32> to vector<16x128xf32>
    %22 = arith.addf %19, %21 : vector<16x128xf32>
    %c0_17 = arith.constant 0 : index
    %c0_18 = arith.constant 0 : index
    %23 = vector.load %arg8[%c0_17, %c0_18] : memref<16x128xf32, #tpu.memory_space<vmem>>, vector<16x128xf32>
    tpu.vector_store %arg8[%c0_17, %c0_18], %22 {strides = array<i32>} : memref<16x128xf32, #tpu.memory_space<vmem>>, vector<16x128xf32>,
    return
  }
  func.func @transform_0(%arg0: i32) -> (i32, i32) {
    %c0_i32 = arith.constant 0 : i32
    %c0_i32_0 = arith.constant 0 : i32
    return %arg0, %c0_i32 : i32, i32
  }
  func.func @transform_1(%arg0: i32) -> (i32, i32) {
    %c0_i32 = arith.constant 0 : i32
    %c0_i32_0 = arith.constant 0 : i32
    %c0_i32_1 = arith.constant 0 : i32
    return %c0_i32, %c0_i32_0 : i32, i32
  }
  func.func @transform_2(%arg0: i32) -> (i32, i32) {
    %c0_i32 = arith.constant 0 : i32
    %c0_i32_0 = arith.constant 0 : i32
    %c0_i32_1 = arith.constant 0 : i32
    return %c0_i32, %c0_i32_0 : i32, i32
  }
  func.func @transform_3(%arg0: i32) -> (i32, i32) {
    %c0_i32 = arith.constant 0 : i32
    %c0_i32_0 = arith.constant 0 : i32
    %c0_i32_1 = arith.constant 0 : i32
    return %c0_i32, %c0_i32_0 : i32, i32
  }
  func.func @transform_4(%arg0: i32) -> (i32, i32) {
    %c0_i32 = arith.constant 0 : i32
    %c0_i32_0 = arith.constant 0 : i32
    %c0_i32_1 = arith.constant 0 : i32
    return %c0_i32, %c0_i32_0 : i32, i32
  }
  func.func @transform_5(%arg0: i32) -> (i32, i32) {
    %c0_i32 = arith.constant 0 : i32
    %c0_i32_0 = arith.constant 0 : i32
    %c0_i32_1 = arith.constant 0 : i32
    return %c0_i32, %c0_i32_0 : i32, i32
  }
  func.func @transform_6(%arg0: i32) -> (i32, i32) {
    %c0_i32 = arith.constant 0 : i32
    %c0_i32_0 = arith.constant 0 : i32
    %c0_i32_1 = arith.constant 0 : i32
    return %c0_i32, %c0_i32_0 : i32, i32
  }
  func.func @transform_7(%arg0: i32) -> (i32, i32) {
    %c0_i32 = arith.constant 0 : i32
    %c0_i32_0 = arith.constant 0 : i32
    return %arg0, %c0_i32 : i32, i32
  }
}

</mosaic_0001>

<llo_original>
// kernel: two_hidden_layer_fc.1
$region0: #{two_hidden_layer_fc.1}
  #allocation0 [shape = 'u32[]', space=smem, size = 0x4, offset = 0x4, fixed_abs, tag = 'smem constant byte address 0x4 - core index']
  #allocation1 [shape = 'u32[144,128]{1,0:T(1,128)}', space=vmem, size = 0x12000, scoped, tag = 'internal scratch']
  %s0 = inlined_call_operand.vmem [shape: f32[16,128], index: 0, kind: input, shape index: {}]
  %s1 = inlined_call_operand.vmem [shape: bf16[128,128], index: 1, kind: input, shape index: {}]
  %s2 = inlined_call_operand.vmem [shape: f32[1,128], index: 2, kind: input, shape index: {}]
  %s3 = inlined_call_operand.vmem [shape: bf16[128,128], index: 3, kind: input, shape index: {}]
  %s4 = inlined_call_operand.vmem [shape: f32[1,128], index: 4, kind: input, shape index: {}]
  %s5 = inlined_call_operand.vmem [shape: bf16[128,128], index: 5, kind: input, shape index: {}]
  %s6 = inlined_call_operand.vmem [shape: f32[1,128], index: 6, kind: input, shape index: {}]
  %s7 = inlined_call_operand.hbm [shape: f32[16,128], index: 7, kind: output, shape index: {}]
  %s8 = sld [smem:[#allocation0]]
  $region38: #{two_hidden_layer_fc.1} parent=0
    _
  %s10 = ssub.s32 1, %s8
  %s11 = scalar_select 0, %s10, %s8
  $region1: #{two_hidden_layer_fc.1} parent=0
    #allocation2 [shape = 'u8[8192]{0}', space=vmem, size = 0x2000, scoped, tag = 'output window, operand 0, single buffered']
    #allocation3 [shape = 's32[1]{0}', space=sflag, size = 0x4, scoped, tag = 'scoped memory for two_hidden_layer_fc.1']
    %12 = vsyncpa [#allocation3], 0
    // Predicated region
    $region2: #{two_hidden_layer_fc.1} parent=1 // pred_check
      _
    $region3: #{two_hidden_layer_fc.1} parent=1 // pred_check_branch
      %14 = sbr.rel (0) target = $region5
    $region4: #{two_hidden_layer_fc.1} parent=1 // pred_region
      _
    $region5: #{two_hidden_layer_fc.1} parent=1 // pred_fallthru
      _
    // Predicated region
    $region6: #{two_hidden_layer_fc.1} parent=1 // pred_check
      _
    $region7: #{two_hidden_layer_fc.1} parent=1 // pred_check_branch
      %16 = sbr.rel (0) target = $region9
    $region8: #{two_hidden_layer_fc.1} parent=1 // pred_region
      _
    $region9: #{two_hidden_layer_fc.1} parent=1 // pred_fallthru
      _
    // Predicated region
    $region10: #{two_hidden_layer_fc.1} parent=1 // pred_check
      _
    $region11: #{two_hidden_layer_fc.1} parent=1 // pred_check_branch
      %18 = sbr.rel (0) target = $region13
    $region12: #{two_hidden_layer_fc.1} parent=1 // pred_region
      _
    $region13: #{two_hidden_layer_fc.1} parent=1 // pred_fallthru
      _
    // Predicated region
    $region14: #{two_hidden_layer_fc.1} parent=1 // pred_check
      _
    $region15: #{two_hidden_layer_fc.1} parent=1 // pred_check_branch
      %20 = sbr.rel (0) target = $region17
    $region16: #{two_hidden_layer_fc.1} parent=1 // pred_region
      _
    $region17: #{two_hidden_layer_fc.1} parent=1 // pred_fallthru
      _
    // Predicated region
    $region18: #{two_hidden_layer_fc.1} parent=1 // pred_check
      _
    $region19: #{two_hidden_layer_fc.1} parent=1 // pred_check_branch
      %22 = sbr.rel (0) target = $region21
    $region20: #{two_hidden_layer_fc.1} parent=1 // pred_region
      _
    $region21: #{two_hidden_layer_fc.1} parent=1 // pred_fallthru
      _
    // Predicated region
    $region22: #{two_hidden_layer_fc.1} parent=1 // pred_check
      _
    $region23: #{two_hidden_layer_fc.1} parent=1 // pred_check_branch
      %24 = sbr.rel (0) target = $region25
    $region24: #{two_hidden_layer_fc.1} parent=1 // pred_region
      _
    $region25: #{two_hidden_layer_fc.1} parent=1 // pred_fallthru
      _
    // Predicated region
    $region26: #{two_hidden_layer_fc.1} parent=1 // pred_check
      _
    $region27: #{two_hidden_layer_fc.1} parent=1 // pred_check_branch
      %26 = sbr.rel (0) target = $region29
    $region28: #{two_hidden_layer_fc.1} parent=1 // pred_region
      _
    $region29: #{two_hidden_layer_fc.1} parent=1 // pred_fallthru
      _
    %v28 = vld [vmem:[%s0] sm:$0xff]
    %v29 = vld [vmem:[%s0 + $0x8] sm:$0xff]
    %v30 = vpack.c.bf16 %v29, %v28
    %v31 = vld [vmem:[%s1] sm:$0xf]
    %v32 = vld [vmem:[%s1 + $0x4] sm:$0xf]
    %v33 = vld [vmem:[%s1 + $0x8] sm:$0xf]
    %v34 = vld [vmem:[%s1 + $0xc] sm:$0xf]
    %v35 = vld [vmem:[%s1 + $0x10] sm:$0xf]
    %v36 = vld [vmem:[%s1 + $0x14] sm:$0xf]
    %v37 = vld [vmem:[%s1 + $0x18] sm:$0xf]
    %v38 = vld [vmem:[%s1 + $0x1c] sm:$0xf]
    %v39 = vld [vmem:[%s1 + $0x20] sm:$0xf]
    %v40 = vld [vmem:[%s1 + $0x24] sm:$0xf]
    %v41 = vld [vmem:[%s1 + $0x28] sm:$0xf]
    %v42 = vld [vmem:[%s1 + $0x2c] sm:$0xf]
    %v43 = vld [vmem:[%s1 + $0x30] sm:$0xf]
    %v44 = vld [vmem:[%s1 + $0x34] sm:$0xf]
    %v45 = vld [vmem:[%s1 + $0x38] sm:$0xf]
    %v46 = vld [vmem:[%s1 + $0x3c] sm:$0xf]
    %v47 = vld [vmem:[%s2] sm:$0x1]
    %v49 = vlaneseq
    %v50 = vshrl.u32 %v49, 7
    %v51 = vsub.s32 0, %v50
    %v52 = vrot.slane %v47, %v51
    %v70 = vunpack.c.l.b16 %v31
    %v71 = vunpack.c.l.b16 %v32
    %v72 = vunpack.c.l.b16 %v33
    %v73 = vunpack.c.l.b16 %v34
    %v74 = vunpack.c.l.b16 %v35
    %v75 = vunpack.c.l.b16 %v36
    %v76 = vunpack.c.l.b16 %v37
    %v77 = vunpack.c.l.b16 %v38
    %v78 = vunpack.c.l.b16 %v39
    %v79 = vunpack.c.l.b16 %v40
    %v80 = vunpack.c.l.b16 %v41
    %v81 = vunpack.c.l.b16 %v42
    %v82 = vunpack.c.l.b16 %v43
    %v83 = vunpack.c.l.b16 %v44
    %v84 = vunpack.c.l.b16 %v45
    %v85 = vunpack.c.l.b16 %v46
    %v86 = vpack.c.b16 %v71, %v70
    %v87 = vpack.c.b16 %v73, %v72
    %v88 = vpack.c.b16 %v75, %v74
    %v89 = vpack.c.b16 %v77, %v76
    %v90 = vpack.c.b16 %v79, %v78
    %v91 = vpack.c.b16 %v81, %v80
    %v92 = vpack.c.b16 %v83, %v82
    %v93 = vpack.c.b16 %v85, %v84
    %102 = vmatprep.subr.bf16.mxu0 0
    %103 = vmatpush1.bf16.msra.mxu0 %v86
    %104 = vmatprep.subr.bf16.mxu0 0
    %105 = vmatpush1.bf16.msra.mxu0 %v87
    %106 = vmatprep.subr.bf16.mxu0 0
    %107 = vmatpush1.bf16.msra.mxu0 %v88
    %108 = vmatprep.subr.bf16.mxu0 0
    %109 = vmatpush1.bf16.msra.mxu0 %v89
    %110 = vmatprep.subr.bf16.mxu0 0
    %111 = vmatpush1.bf16.msra.mxu0 %v90
    %112 = vmatprep.subr.bf16.mxu0 0
    %113 = vmatpush1.bf16.msra.mxu0 %v91
    %114 = vmatprep.subr.bf16.mxu0 0
    %115 = vmatpush1.bf16.msra.mxu0 %v92
    %116 = vmatprep.subr.bf16.mxu0 0
    %117 = vmatpush1.bf16.msra.mxu0 %v93
    %118 = vmatprep.subr.bf16.mxu0 0
    %119 = vmatpush1.bf16.msra.mxu0 0
    %120 = vmatprep.subr.bf16.mxu0 0
    %121 = vmatpush1.bf16.msra.mxu0 0
    %122 = vmatprep.subr.bf16.mxu0 0
    %123 = vmatpush1.bf16.msra.mxu0 0
    %124 = vmatprep.subr.bf16.mxu0 0
    %125 = vmatpush1.bf16.msra.mxu0 0
    %126 = vmatprep.subr.bf16.mxu0 0
    %127 = vmatpush1.bf16.msra.mxu0 0
    %128 = vmatprep.subr.bf16.mxu0 0
    %129 = vmatpush1.bf16.msra.mxu0 0
    %130 = vmatprep.subr.bf16.mxu0 0
    %131 = vmatpush1.bf16.msra.mxu0 0
    %132 = vmatprep.subr.bf16.mxu0 0
    %133 = vmatpush1.bf16.msra.mxu0 0
    %134 = vmatprep.mubr.bf16.mxu0 0
    %135 = vmatmul.mubr.bf16.gmra.mrb[0].mxu0 %v30
    %v136 = vpop.f32.mrb[0].mxu0
    %v137 = vadd.f32 %v52, %v136
    %v138 = vpop.f32.mrb[0].mxu0
    %v139 = vpop.f32.mrb[0].mxu0
    %v140 = vadd.f32 %v52, %v139
    %v141 = vpop.f32.mrb[0].mxu0
    %142 = vdwg.mxu0
    %v143 = vmax.f32 %v137, 0.0
    %v144 = vmax.f32 %v140, 0.0
    %v145 = vpack.c.bf16 %v144, %v143
    %v146 = vld [vmem:[%s3] sm:$0xf]
    %v147 = vld [vmem:[%s3 + $0x4] sm:$0xf]
    %v148 = vld [vmem:[%s3 + $0x8] sm:$0xf]
    %v149 = vld [vmem:[%s3 + $0xc] sm:$0xf]
    %v150 = vld [vmem:[%s3 + $0x10] sm:$0xf]
    %v151 = vld [vmem:[%s3 + $0x14] sm:$0xf]
    %v152 = vld [vmem:[%s3 + $0x18] sm:$0xf]
    %v153 = vld [vmem:[%s3 + $0x1c] sm:$0xf]
    %v154 = vld [vmem:[%s3 + $0x20] sm:$0xf]
    %v155 = vld [vmem:[%s3 + $0x24] sm:$0xf]
    %v156 = vld [vmem:[%s3 + $0x28] sm:$0xf]
    %v157 = vld [vmem:[%s3 + $0x2c] sm:$0xf]
    %v158 = vld [vmem:[%s3 + $0x30] sm:$0xf]
    %v159 = vld [vmem:[%s3 + $0x34] sm:$0xf]
    %v160 = vld [vmem:[%s3 + $0x38] sm:$0xf]
    %v161 = vld [vmem:[%s3 + $0x3c] sm:$0xf]
    %v162 = vld [vmem:[%s4] sm:$0x1]
    %v164 = vlaneseq
    %v165 = vshrl.u32 %v164, 7
    %v166 = vsub.s32 0, %v165
    %v167 = vrot.slane %v162, %v166
    %v185 = vunpack.c.l.b16 %v146
    %v186 = vunpack.c.l.b16 %v147
    %v187 = vunpack.c.l.b16 %v148
    %v188 = vunpack.c.l.b16 %v149
    %v189 = vunpack.c.l.b16 %v150
    %v190 = vunpack.c.l.b16 %v151
    %v191 = vunpack.c.l.b16 %v152
    %v192 = vunpack.c.l.b16 %v153
    %v193 = vunpack.c.l.b16 %v154
    %v194 = vunpack.c.l.b16 %v155
    %v195 = vunpack.c.l.b16 %v156
    %v196 = vunpack.c.l.b16 %v157
    %v197 = vunpack.c.l.b16 %v158
    %v198 = vunpack.c.l.b16 %v159
    %v199 = vunpack.c.l.b16 %v160
    %v200 = vunpack.c.l.b16 %v161
    %v201 = vpack.c.b16 %v186, %v185
    %v202 = vpack.c.b16 %v188, %v187
    %v203 = vpack.c.b16 %v190, %v189
    %v204 = vpack.c.b16 %v192, %v191
    %v205 = vpack.c.b16 %v194, %v193
    %v206 = vpack.c.b16 %v196, %v195
    %v207 = vpack.c.b16 %v198, %v197
    %v208 = vpack.c.b16 %v200, %v199
    %217 = vmatprep.subr.bf16.mxu0 0
    %218 = vmatpush1.bf16.msra.mxu0 %v201
    %219 = vmatprep.subr.bf16.mxu0 0
    %220 = vmatpush1.bf16.msra.mxu0 %v202
    %221 = vmatprep.subr.bf16.mxu0 0
    %222 = vmatpush1.bf16.msra.mxu0 %v203
    %223 = vmatprep.subr.bf16.mxu0 0
    %224 = vmatpush1.bf16.msra.mxu0 %v204
    %225 = vmatprep.subr.bf16.mxu0 0
    %226 = vmatpush1.bf16.msra.mxu0 %v205
    %227 = vmatprep.subr.bf16.mxu0 0
    %228 = vmatpush1.bf16.msra.mxu0 %v206
    %229 = vmatprep.subr.bf16.mxu0 0
    %230 = vmatpush1.bf16.msra.mxu0 %v207
    %231 = vmatprep.subr.bf16.mxu0 0
    %232 = vmatpush1.bf16.msra.mxu0 %v208
    %233 = vmatprep.subr.bf16.mxu0 0
    %234 = vmatpush1.bf16.msra.mxu0 0
    %235 = vmatprep.subr.bf16.mxu0 0
    %236 = vmatpush1.bf16.msra.mxu0 0
    %237 = vmatprep.subr.bf16.mxu0 0
    %238 = vmatpush1.bf16.msra.mxu0 0
    %239 = vmatprep.subr.bf16.mxu0 0
    %240 = vmatpush1.bf16.msra.mxu0 0
    %241 = vmatprep.subr.bf16.mxu0 0
    %242 = vmatpush1.bf16.msra.mxu0 0
    %243 = vmatprep.subr.bf16.mxu0 0
    %244 = vmatpush1.bf16.msra.mxu0 0
    %245 = vmatprep.subr.bf16.mxu0 0
    %246 = vmatpush1.bf16.msra.mxu0 0
    %247 = vmatprep.subr.bf16.mxu0 0
    %248 = vmatpush1.bf16.msra.mxu0 0
    %249 = vmatprep.mubr.bf16.mxu0 0
    %250 = vmatmul.mubr.bf16.gmra.mrb[0].mxu0 %v145
    %v251 = vpop.f32.mrb[0].mxu0
    %v252 = vadd.f32 %v167, %v251
    %v253 = vpop.f32.mrb[0].mxu0
    %v254 = vpop.f32.mrb[0].mxu0
    %v255 = vadd.f32 %v167, %v254
    %v256 = vpop.f32.mrb[0].mxu0
    %257 = vdwg.mxu0
    %v258 = vmax.f32 %v252, 0.0
    %v259 = vmax.f32 %v255, 0.0
    %v260 = vpack.c.bf16 %v259, %v258
    %v261 = vld [vmem:[%s5] sm:$0xf]
    %v262 = vld [vmem:[%s5 + $0x4] sm:$0xf]
    %v263 = vld [vmem:[%s5 + $0x8] sm:$0xf]
    %v264 = vld [vmem:[%s5 + $0xc] sm:$0xf]
    %v265 = vld [vmem:[%s5 + $0x10] sm:$0xf]
    %v266 = vld [vmem:[%s5 + $0x14] sm:$0xf]
    %v267 = vld [vmem:[%s5 + $0x18] sm:$0xf]
    %v268 = vld [vmem:[%s5 + $0x1c] sm:$0xf]
    %v269 = vld [vmem:[%s5 + $0x20] sm:$0xf]
    %v270 = vld [vmem:[%s5 + $0x24] sm:$0xf]
    %v271 = vld [vmem:[%s5 + $0x28] sm:$0xf]
    %v272 = vld [vmem:[%s5 + $0x2c] sm:$0xf]
    %v273 = vld [vmem:[%s5 + $0x30] sm:$0xf]
    %v274 = vld [vmem:[%s5 + $0x34] sm:$0xf]
    %v275 = vld [vmem:[%s5 + $0x38] sm:$0xf]
    %v276 = vld [vmem:[%s5 + $0x3c] sm:$0xf]
    %v277 = vld [vmem:[%s6] sm:$0x1]
    %v279 = vlaneseq
    %v280 = vshrl.u32 %v279, 7
    %v281 = vsub.s32 0, %v280
    %v282 = vrot.slane %v277, %v281
    %v300 = vunpack.c.l.b16 %v261
    %v301 = vunpack.c.l.b16 %v262
    %v302 = vunpack.c.l.b16 %v263
    %v303 = vunpack.c.l.b16 %v264
    %v304 = vunpack.c.l.b16 %v265
    %v305 = vunpack.c.l.b16 %v266
    %v306 = vunpack.c.l.b16 %v267
    %v307 = vunpack.c.l.b16 %v268
    %v308 = vunpack.c.l.b16 %v269
    %v309 = vunpack.c.l.b16 %v270
    %v310 = vunpack.c.l.b16 %v271
    %v311 = vunpack.c.l.b16 %v272
    %v312 = vunpack.c.l.b16 %v273
    %v313 = vunpack.c.l.b16 %v274
    %v314 = vunpack.c.l.b16 %v275
    %v315 = vunpack.c.l.b16 %v276
    %v316 = vpack.c.b16 %v301, %v300
    %v317 = vpack.c.b16 %v303, %v302
    %v318 = vpack.c.b16 %v305, %v304
    %v319 = vpack.c.b16 %v307, %v306
    %v320 = vpack.c.b16 %v309, %v308
    %v321 = vpack.c.b16 %v311, %v310
    %v322 = vpack.c.b16 %v313, %v312
    %v323 = vpack.c.b16 %v315, %v314
    %332 = vmatprep.subr.bf16.mxu0 0
    %333 = vmatpush1.bf16.msra.mxu0 %v316
    %334 = vmatprep.subr.bf16.mxu0 0
    %335 = vmatpush1.bf16.msra.mxu0 %v317
    %336 = vmatprep.subr.bf16.mxu0 0
    %337 = vmatpush1.bf16.msra.mxu0 %v318
    %338 = vmatprep.subr.bf16.mxu0 0
    %339 = vmatpush1.bf16.msra.mxu0 %v319
    %340 = vmatprep.subr.bf16.mxu0 0
    %341 = vmatpush1.bf16.msra.mxu0 %v320
    %342 = vmatprep.subr.bf16.mxu0 0
    %343 = vmatpush1.bf16.msra.mxu0 %v321
    %344 = vmatprep.subr.bf16.mxu0 0
    %345 = vmatpush1.bf16.msra.mxu0 %v322
    %346 = vmatprep.subr.bf16.mxu0 0
    %347 = vmatpush1.bf16.msra.mxu0 %v323
    %348 = vmatprep.subr.bf16.mxu0 0
    %349 = vmatpush1.bf16.msra.mxu0 0
    %350 = vmatprep.subr.bf16.mxu0 0
    %351 = vmatpush1.bf16.msra.mxu0 0
    %352 = vmatprep.subr.bf16.mxu0 0
    %353 = vmatpush1.bf16.msra.mxu0 0
    %354 = vmatprep.subr.bf16.mxu0 0
    %355 = vmatpush1.bf16.msra.mxu0 0
    %356 = vmatprep.subr.bf16.mxu0 0
    %357 = vmatpush1.bf16.msra.mxu0 0
    %358 = vmatprep.subr.bf16.mxu0 0
    %359 = vmatpush1.bf16.msra.mxu0 0
    %360 = vmatprep.subr.bf16.mxu0 0
    %361 = vmatpush1.bf16.msra.mxu0 0
    %362 = vmatprep.subr.bf16.mxu0 0
    %363 = vmatpush1.bf16.msra.mxu0 0
    %364 = vmatprep.mubr.bf16.mxu0 0
    %365 = vmatmul.mubr.bf16.gmra.mrb[0].mxu0 %v260
    %v366 = vpop.f32.mrb[0].mxu0
    %v367 = vadd.f32 %v282, %v366
    %v368 = vpop.f32.mrb[0].mxu0
    %v369 = vpop.f32.mrb[0].mxu0
    %v370 = vadd.f32 %v282, %v369
    %v371 = vpop.f32.mrb[0].mxu0
    %372 = vdwg.mxu0
    %373 = vst [vmem:[#allocation2] sm:$0xff] %v367
    %374 = vst [vmem:[#allocation2 + $0x8] sm:$0xff] %v370
    // Predicated region
    $region30: #{two_hidden_layer_fc.1} parent=1 // pred_check
      _
    $region31: #{two_hidden_layer_fc.1} parent=1 // pred_check_branch
      %376 = sbr.rel (0) target = $region33
    $region32: #{two_hidden_layer_fc.1} parent=1 // pred_region
      %s378 = ssub.s32 256, 256
      %379 = vsyncadd [#allocation3], %s378
      %s380 = sshll.u32 [#allocation2], 4
      %s381 = int_to_ptr.vmem [resolvable:$true] %s380
      %386 = dma.vmem_to_hbm [thread:$0]  %s381, 256, %s7, [#allocation3], 128, 128, 8
    $region33: #{two_hidden_layer_fc.1} parent=1 // pred_fallthru
      _
    // Predicated region
    $region34: #{two_hidden_layer_fc.1} parent=1 // pred_check
      _
    $region35: #{two_hidden_layer_fc.1} parent=1 // pred_check_branch
      %388 = sbr.rel (0) target = $region37
    $region36: #{two_hidden_layer_fc.1} parent=1 // pred_region
      %389 = dma.done [#allocation3], 256
    $region37: #{two_hidden_layer_fc.1} parent=1 // pred_fallthru
      _
    %390 = vsyncpa [#allocation3], 1

</llo_original>
